<compile_context>
chip_gen: v6e
topology: v6e:2x2x1
jax: 0.10.0
libtpu: 0.0.40
codegen_flags: <defaults>
</compile_context>

<pallas_src>
import jax
import jax.numpy as jnp
from jax.experimental import pallas as pl
from jax.experimental.pallas import tpu as pltpu


def _make_cam_kernel(tb, hw):
    inv_hw = 1.0 / float(hw)

    def cam_kernel(x_ref, w1_ref, b1_ref, w2_ref, b2_ref, o_ref):
        # Spatial pooling: lane-axis reductions over the full (unpadded) HW.
        sum_pool = jnp.sum(x_ref[...], axis=-1, dtype=jnp.float32)    # (tb, C)
        max_pool = jnp.max(x_ref[...], axis=-1).astype(jnp.float32)   # (tb, C)
        avg_pool = sum_pool * inv_hw

        w1 = w1_ref[...].astype(jnp.float32)                          # (C, Ch)
        b1 = b1_ref[...].astype(jnp.float32)                          # (1, Ch)
        w2 = w2_ref[...].astype(jnp.float32)                          # (Ch, C)
        b2 = b2_ref[...].astype(jnp.float32)                          # (1, C)

        # Fused MLP: stack avg & max pooled operands -> one dot per layer.
        pooled = jnp.concatenate([avg_pool, max_pool], axis=0)        # (2*tb, C)
        h = jnp.maximum(
            jnp.dot(pooled, w1, preferred_element_type=jnp.float32) + b1, 0.0)
        # TODO(synk): Dropout(p=0.5) is identity in eval mode; training-mode
        # random masking is not implemented.
        o = jnp.maximum(
            jnp.dot(h, w2, preferred_element_type=jnp.float32) + b2, 0.0)

        att = o[:tb] + o[tb:]                                          # (tb, C)
        scale = jax.nn.sigmoid(att).astype(o_ref.dtype)                # (tb, C)

        # Stream the rescaled slab directly from the input buffer.
        o_ref[...] = x_ref[...] * scale[:, :, None]

    return cam_kernel


def _pick_tb(b, tb_max):
    """Largest batch tile <= tb_max dividing B; prefer an even grid >= 2."""
    divisors = [d for d in range(1, b + 1) if b % d == 0 and d <= tb_max]
    if not divisors:
        return 1
    even = [d for d in divisors if (b // d) >= 2 and (b // d) % 2 == 0]
    if even:
        return max(even)
    ge2 = [d for d in divisors if (b // d) >= 2]
    if ge2:
        return max(ge2)
    return max(divisors)


def cam_forward(x, w1, b1, w2, b2, *, target_block_bytes=8 * 1024 * 1024):
    """x: (B, C, H, W). Returns (B, C, H, W). Eval-mode CAM forward."""
    B, C, H, W = x.shape
    HW = H * W
    Ch = w1.shape[1]
    itemsize = jnp.dtype(x.dtype).itemsize

    # No padding: block last dim equals the full flattened spatial dim.
    x_flat = x.reshape(B, C, HW)

    per_batch_bytes = C * HW * itemsize
    tb_max = max(1, target_block_bytes // max(per_batch_bytes, 1))
    tb = _pick_tb(B, tb_max)
    grid = (B // tb,)

    kernel = _make_cam_kernel(tb, HW)

    weight_bytes = int(w1.size * w1.dtype.itemsize + b1.size * b1.dtype.itemsize
                       + w2.size * w2.dtype.itemsize + b2.size * b2.dtype.itemsize)
    cost = pl.CostEstimate(
        flops=int(2 * B * (2 * C * Ch) * 2 + 3 * B * C * HW),
        transcendentals=int(B * C),
        bytes_accessed=int(2 * B * C * HW * itemsize + weight_bytes),
    )

    # Double-buffered input + output slabs + weights, with slack; capped at
    # 48 MiB so it stays within v7x's 64 MiB physical VMEM, floored at 32 MiB
    # (v5e default scoped limit is only 16 MiB).
    block_bytes = tb * per_batch_bytes
    vmem_limit = int(min(max(4 * block_bytes + 4 * weight_bytes + (4 << 20),
                             32 * 1024 * 1024),
                         48 * 1024 * 1024))

    out_flat = pl.pallas_call(
        kernel,
        out_shape=jax.ShapeDtypeStruct((B, C, HW), x.dtype),
        grid_spec=pltpu.PrefetchScalarGridSpec(
            num_scalar_prefetch=0,
            grid=grid,
            in_specs=[
                pl.BlockSpec((tb, C, HW), lambda b: (b, 0, 0)),   # x
                pl.BlockSpec((C, Ch), lambda b: (0, 0)),          # W1
                pl.BlockSpec((1, Ch), lambda b: (0, 0)),          # b1
                pl.BlockSpec((Ch, C), lambda b: (0, 0)),          # W2
                pl.BlockSpec((1, C), lambda b: (0, 0)),           # b2
            ],
            out_specs=pl.BlockSpec((tb, C, HW), lambda b: (b, 0, 0)),
        ),
        compiler_params=pltpu.CompilerParams(
            dimension_semantics=("parallel",),
            vmem_limit_bytes=vmem_limit),
        cost_estimate=cost,
    )(x_flat, w1, b1, w2, b2)

    return out_flat.reshape(B, C, H, W)


def reference_cam(x, w1, b1, w2, b2):
    """Plain-JAX reference mirroring the PyTorch module (eval mode)."""
    B, C, H, W = x.shape
    xf = x.reshape(B, C, -1)
    avg_pool = jnp.mean(xf, axis=-1)   # (B, C)
    max_pool = jnp.max(xf, axis=-1)    # (B, C)

    def mlp(p):
        h = jnp.maximum(p @ w1 + b1, 0.0)
        return jnp.maximum(h @ w2 + b2, 0.0)

    att = mlp(avg_pool) + mlp(max_pool)
    scale = jax.nn.sigmoid(att)[:, :, None, None]
    return x * scale


def _make_params(key, C, Ch):
    k1, k2, k3, k4 = jax.random.split(key, 4)
    bound1 = 1.0 / (C ** 0.5)
    bound2 = 1.0 / (Ch ** 0.5)
    w1 = jax.random.uniform(k1, (C, Ch), jnp.float32, -bound1, bound1)
    b1 = jax.random.uniform(k2, (1, Ch), jnp.float32, -bound1, bound1)
    w2 = jax.random.uniform(k3, (Ch, C), jnp.float32, -bound2, bound2)
    b2 = jax.random.uniform(k4, (1, C), jnp.float32, -bound2, bound2)
    return w1, b1, w2, b2


if __name__ == "__main__":
    key = jax.random.PRNGKey(0)
    reduction_ratio = 16

    # Case 1: HW = 64 (not a multiple of 128) -> exercises the unpadded
    # full-HW block path with masked in-kernel stores.
    B, C, H, W = 2, 64, 8, 8
    Ch = C // reduction_ratio
    kx, kp, key = jax.random.split(key, 3)
    x = jax.random.normal(kx, (B, C, H, W), dtype=jnp.float32)
    w1, b1, w2, b2 = _make_params(kp, C, Ch)
    out = jax.block_until_ready(cam_forward(x, w1, b1, w2, b2))
    ref = reference_cam(x, w1, b1, w2, b2)
    assert out.shape == (B, C, H, W)
    assert jnp.allclose(out, ref, atol=1e-5, rtol=1e-5), "case1 mismatch"

    # Case 2: HW = 256 (multiple of 128), B > 2 -> batch tiling with TB > 1
    # and an even, megacore-friendly grid.
    B, C, H, W = 4, 32, 16, 16
    Ch = C // reduction_ratio
    kx, kp, key = jax.random.split(key, 3)
    x = jax.random.normal(kx, (B, C, H, W), dtype=jnp.float32)
    w1, b1, w2, b2 = _make_params(kp, C, Ch)
    out = jax.block_until_ready(cam_forward(x, w1, b1, w2, b2))
    ref = reference_cam(x, w1, b1, w2, b2)
    assert out.shape == (B, C, H, W)
    assert jnp.allclose(out, ref, atol=1e-5, rtol=1e-5), "case2 mismatch"

    print("KERNEL_OK")
</pallas_src>

<mosaic_0001>
module attributes {stable_mosaic.version = 11 : i64} {
  func.func @cam_kernel(%arg0: i32, %arg1: memref<1x64x64xf32, #tpu.memory_space<vmem>>, %arg2: memref<64x4xf32, #tpu.memory_space<vmem>>, %arg3: memref<1x4xf32, #tpu.memory_space<vmem>>, %arg4: memref<4x64xf32, #tpu.memory_space<vmem>>, %arg5: memref<1x64xf32, #tpu.memory_space<vmem>>, %arg6: memref<1x64x64xf32, #tpu.memory_space<vmem>>) attributes {dimension_semantics = [#tpu.dimension_semantics<parallel>], iteration_bounds = array<i64: 2>, scalar_prefetch = 0 : i64, scratch_operands = 0 : i64, tpu.core_type = #tpu.core_type<tc>, window_params = [{transform_indices = @transform_0, window_bounds = array<i64: 1, 64, 64>}, {pipeline_mode = #tpu.pipeline_mode<synchronous>, transform_indices = @transform_1, window_bounds = array<i64: 64, 4>}, {pipeline_mode = #tpu.pipeline_mode<synchronous>, transform_indices = @transform_2, window_bounds = array<i64: 1, 4>}, {pipeline_mode = #tpu.pipeline_mode<synchronous>, transform_indices = @transform_3, window_bounds = array<i64: 4, 64>}, {pipeline_mode = #tpu.pipeline_mode<synchronous>, transform_indices = @transform_4, window_bounds = array<i64: 1, 64>}, {transform_indices = @transform_5, window_bounds = array<i64: 1, 64, 64>}]} {
    %c0 = arith.constant 0 : index
    %c0_0 = arith.constant 0 : index
    %c0_1 = arith.constant 0 : index
    %0 = vector.load %arg1[%c0, %c0_0, %c0_1] : memref<1x64x64xf32, #tpu.memory_space<vmem>>, vector<1x64x64xf32>
    %cst = arith.constant dense<0.000000e+00> : vector<1x64xf32>
    %1 = vector.multi_reduction <add>, %0, %cst [2] : vector<1x64x64xf32> to vector<1x64xf32>
    %c0_2 = arith.constant 0 : index
    %c0_3 = arith.constant 0 : index
    %c0_4 = arith.constant 0 : index
    %2 = vector.load %arg1[%c0_2, %c0_3, %c0_4] : memref<1x64x64xf32, #tpu.memory_space<vmem>>, vector<1x64x64xf32>
    %cst_5 = arith.constant dense<0xFF800000> : vector<1x64xf32>
    %3 = vector.multi_reduction <maximumf>, %2, %cst_5 [2] : vector<1x64x64xf32> to vector<1x64xf32>
    %cst_6 = arith.constant 1.562500e-02 : f32
    %4 = vector.broadcast %cst_6 : f32 to vector<1x64xf32>
    %5 = arith.mulf %1, %4 : vector<1x64xf32>
    %c0_7 = arith.constant 0 : index
    %c0_8 = arith.constant 0 : index
    %6 = vector.load %arg2[%c0_7, %c0_8] : memref<64x4xf32, #tpu.memory_space<vmem>>, vector<64x4xf32>
    %c0_9 = arith.constant 0 : index
    %c0_10 = arith.constant 0 : index
    %7 = vector.load %arg3[%c0_9, %c0_10] : memref<1x4xf32, #tpu.memory_space<vmem>>, vector<1x4xf32>
    %c0_11 = arith.constant 0 : index
    %c0_12 = arith.constant 0 : index
    %8 = vector.load %arg4[%c0_11, %c0_12] : memref<4x64xf32, #tpu.memory_space<vmem>>, vector<4x64xf32>
    %c0_13 = arith.constant 0 : index
    %c0_14 = arith.constant 0 : index
    %9 = vector.load %arg5[%c0_13, %c0_14] : memref<1x64xf32, #tpu.memory_space<vmem>>, vector<1x64xf32>
    %10 = tpu.concatenate %5, %3 in 0 : vector<1x64xf32>, vector<1x64xf32> -> vector<2x64xf32>
    %cst_15 = arith.constant dense<0.000000e+00> : vector<2x4xf32>
    %11 = tpu.matmul %10, %6, %cst_15 {dimension_numbers = #tpu.dot_dimension_numbers<[1], [0], [0], [1], [0, 0, 1, 1], [], []>} : vector<2x64xf32>, vector<64x4xf32>, vector<2x4xf32> -> vector<2x4xf32>
    %12 = vector.broadcast %7 : vector<1x4xf32> to vector<2x4xf32>
    %13 = arith.addf %11, %12 : vector<2x4xf32>
    %cst_16 = arith.constant 0.000000e+00 : f32
    %14 = vector.broadcast %cst_16 : f32 to vector<2x4xf32>
    %15 = arith.maximumf %13, %14 : vector<2x4xf32>
    %cst_17 = arith.constant dense<0.000000e+00> : vector<2x64xf32>
    %16 = tpu.matmul %15, %8, %cst_17 {dimension_numbers = #tpu.dot_dimension_numbers<[1], [0], [0], [1], [0, 0, 1, 1], [], []>} : vector<2x4xf32>, vector<4x64xf32>, vector<2x64xf32> -> vector<2x64xf32>
    %17 = vector.broadcast %9 : vector<1x64xf32> to vector<2x64xf32>
    %18 = arith.addf %16, %17 : vector<2x64xf32>
    %cst_18 = arith.constant 0.000000e+00 : f32
    %19 = vector.broadcast %cst_18 : f32 to vector<2x64xf32>
    %20 = arith.maximumf %18, %19 : vector<2x64xf32>
    %21 = vector.extract_strided_slice %20 {offsets = [0, 0], sizes = [1, 64], strides = [1, 1]} : vector<2x64xf32> to vector<1x64xf32>
    %22 = vector.extract_strided_slice %20 {offsets = [1, 0], sizes = [1, 64], strides = [1, 1]} : vector<2x64xf32> to vector<1x64xf32>
    %23 = arith.addf %21, %22 : vector<1x64xf32>
    %24 = arith.negf %23 : vector<1x64xf32>
    %25 = math.exp %24 : vector<1x64xf32>
    %cst_19 = arith.constant 1.000000e+00 : f32
    %26 = vector.broadcast %cst_19 : f32 to vector<1x64xf32>
    %27 = arith.addf %26, %25 : vector<1x64xf32>
    %28 = arith.divf %26, %27 : vector<1x64xf32>
    %c0_20 = arith.constant 0 : index
    %c0_21 = arith.constant 0 : index
    %c0_22 = arith.constant 0 : index
    %29 = vector.load %arg1[%c0_20, %c0_21, %c0_22] : memref<1x64x64xf32, #tpu.memory_space<vmem>>, vector<1x64x64xf32>
    %30 = vector.shape_cast %28 : vector<1x64xf32> to vector<1x64x1xf32>
    %31 = vector.broadcast %30 : vector<1x64x1xf32> to vector<1x64x64xf32>
    %32 = arith.mulf %29, %31 : vector<1x64x64xf32>
    %c0_23 = arith.constant 0 : index
    %c0_24 = arith.constant 0 : index
    %c0_25 = arith.constant 0 : index
    %33 = vector.load %arg6[%c0_23, %c0_24, %c0_25] : memref<1x64x64xf32, #tpu.memory_space<vmem>>, vector<1x64x64xf32>
    tpu.vector_store %arg6[%c0_23, %c0_24, %c0_25], %32 {strides = array<i32>} : memref<1x64x64xf32, #tpu.memory_space<vmem>>, vector<1x64x64xf32>,
    return
  }
  func.func @transform_0(%arg0: i32) -> (i32, i32, i32) {
    %c0_i32 = arith.constant 0 : i32
    %c0_i32_0 = arith.constant 0 : i32
    %c0_i32_1 = arith.constant 0 : i32
    return %arg0, %c0_i32, %c0_i32_0 : i32, i32, i32
  }
  func.func @transform_1(%arg0: i32) -> (i32, i32) {
    %c0_i32 = arith.constant 0 : i32
    %c0_i32_0 = arith.constant 0 : i32
    %c0_i32_1 = arith.constant 0 : i32
    return %c0_i32, %c0_i32_0 : i32, i32
  }
  func.func @transform_2(%arg0: i32) -> (i32, i32) {
    %c0_i32 = arith.constant 0 : i32
    %c0_i32_0 = arith.constant 0 : i32
    %c0_i32_1 = arith.constant 0 : i32
    return %c0_i32, %c0_i32_0 : i32, i32
  }
  func.func @transform_3(%arg0: i32) -> (i32, i32) {
    %c0_i32 = arith.constant 0 : i32
    %c0_i32_0 = arith.constant 0 : i32
    %c0_i32_1 = arith.constant 0 : i32
    return %c0_i32, %c0_i32_0 : i32, i32
  }
  func.func @transform_4(%arg0: i32) -> (i32, i32) {
    %c0_i32 = arith.constant 0 : i32
    %c0_i32_0 = arith.constant 0 : i32
    %c0_i32_1 = arith.constant 0 : i32
    return %c0_i32, %c0_i32_0 : i32, i32
  }
  func.func @transform_5(%arg0: i32) -> (i32, i32, i32) {
    %c0_i32 = arith.constant 0 : i32
    %c0_i32_0 = arith.constant 0 : i32
    %c0_i32_1 = arith.constant 0 : i32
    return %arg0, %c0_i32, %c0_i32_0 : i32, i32, i32
  }
}

</mosaic_0001>

<llo_original>
// kernel: tpu_custom_call.1
$region0: #{tpu_custom_call.1}
  #allocation0 [shape = 'u32[]', space=smem, size = 0x4, offset = 0x4, fixed_abs, tag = 'smem constant byte address 0x4 - core index']
  #allocation1 [shape = 'u32[144,128]{1,0:T(1,128)}', space=vmem, size = 0x12000, scoped, tag = 'internal scratch']
  %s0 = inlined_call_operand.hbm [shape: f32[2,64,64], index: 0, kind: input, shape index: {}]
  %s1 = inlined_call_operand.vmem [shape: f32[64,4], index: 1, kind: input, shape index: {}]
  %s2 = inlined_call_operand.vmem [shape: f32[1,4], index: 2, kind: input, shape index: {}]
  %s3 = inlined_call_operand.vmem [shape: f32[4,64], index: 3, kind: input, shape index: {}]
  %s4 = inlined_call_operand.vmem [shape: f32[1,64], index: 4, kind: input, shape index: {}]
  %s5 = inlined_call_operand.hbm [shape: f32[2,64,64], index: 5, kind: output, shape index: {}]
  %s6 = sld [smem:[#allocation0]]
  $region57: #{tpu_custom_call.1} parent=0
    _
  %s8 = ssub.s32 1, %s6
  %s9 = scalar_select 0, %s8, %s6
  $region1: #{tpu_custom_call.1} parent=0
    #allocation2 [shape = 'u8[65536]{0}', space=vmem, size = 0x10000, scoped, tag = 'input window, operand 0']
    #allocation3 [shape = 's32[2]{0}', space=sflag, size = 0x8, scoped, tag = 'scoped memory for tpu_custom_call.1']
    #allocation4 [shape = 's32[2]{0}', space=sflag, size = 0x8, scoped, tag = 'scoped memory for tpu_custom_call.1']
    #allocation5 [shape = 'u8[65536]{0}', space=vmem, size = 0x10000, scoped, tag = 'output window, operand 0']
    %10 = vsyncpa [#allocation3], 0
    %s11 = scalar_lea.sflag [#allocation3], 1
    %12 = vsyncpa %s11, 0
    %13 = vsyncpa [#allocation4], 0
    %s14 = scalar_lea.sflag [#allocation4], 1
    %15 = vsyncpa %s14, 0
    loop: start=0, step=1, limit=4
    $region2: #{tpu_custom_call.1} parent=1 // loop_pre_header
      _
    $region3: #{tpu_custom_call.1} parent=1 // loop_header
      %s17 = sphi 0, %s21
      %p18 = scmp.ge.s32.totalorder %s17, 4
      %s27 = sphi 0, %s29
      %s30 = sphi 0, %s27
      %s31 = sphi 0, %s30
      %s47 = sphi 0, %s31
      %s51 = sphi 0, %s51
      %s53 = sphi 0, %s51
      %s54 = sphi 0, %s53
      %s68 = sphi 0, %s54
      %s72 = sphi 0, %s72
      %s74 = sphi 0, %s72
      %s75 = sphi 0, %s74
      %s89 = sphi 0, %s75
      %s93 = sphi 0, %s93
      %s95 = sphi 0, %s93
      %s96 = sphi 0, %s95
      %s110 = sphi 0, %s96
      %s114 = sphi 0, %s114
      %s116 = sphi 0, %s114
      %s117 = sphi 0, %s116
      %s131 = sphi 0, %s117
      %s137 = sphi 0, %s139
      %s140 = sphi 0, %s137
      %s141 = sphi 0, %s140
      %s157 = sphi 0, %s141
    $region4: #{tpu_custom_call.1} parent=1 // loop_header_branch
      %20 = sbr.rel (%p18) target = $region8
    $region5: #{tpu_custom_call.1} parent=1 // loop_body
      %s22 = ssub.s32 %s17, 1
      %s23 = ssub.s32 %s17, 2
      %s24 = sadd.s32 %s17, 1
      %s25 = ssub.s32 %s17, %s24
      %p26 = scmp.eq.s32.totalorder %s25, 0
      %s28 = sadd.s32 %s27, 1
      %s29 = scalar_select %p26, %s27, %s28
      %p32 = pneg %p26
      %p33 = scmp.eq.s32.totalorder %s17, 1
      %p34 = por %p32, %p33
      %p35 = scmp.ne.s32.totalorder %s27, %s30
      %p36 = scmp.eq.s32.totalorder %s17, 0
      %p37 = por %p35, %p36
      %p38 = scmp.ne.s32.totalorder %s27, %s30
      %p39 = scmp.eq.s32.totalorder %s22, 1
      %p40 = por %p38, %p39
      %p41 = scmp.ne.s32.totalorder %s30, %s31
      %p42 = scmp.eq.s32.totalorder %s22, 0
      %p43 = por %p41, %p42
      %p44 = scmp.ne.s32.totalorder %s30, %s31
      %p45 = scmp.eq.s32.totalorder %s23, 1
      %p46 = por %p44, %p45
      %p48 = scmp.ne.s32.totalorder %s31, %s47
      %p49 = scmp.eq.s32.totalorder %s23, 0
      %p50 = por %p48, %p49
      %s52 = sadd.s32 %s51, 1
      %p55 = scmp.eq.s32.totalorder %s17, 1
      %p56 = scmp.ne.s32.totalorder %s51, %s53
      %p57 = scmp.eq.s32.totalorder %s17, 0
      %p58 = por %p56, %p57
      %p59 = scmp.ne.s32.totalorder %s51, %s53
      %p60 = scmp.eq.s32.totalorder %s22, 1
      %p61 = por %p59, %p60
      %p62 = scmp.ne.s32.totalorder %s53, %s54
      %p63 = scmp.eq.s32.totalorder %s22, 0
      %p64 = por %p62, %p63
      %p65 = scmp.ne.s32.totalorder %s53, %s54
      %p66 = scmp.eq.s32.totalorder %s23, 1
      %p67 = por %p65, %p66
      %p69 = scmp.ne.s32.totalorder %s54, %s68
      %p70 = scmp.eq.s32.totalorder %s23, 0
      %p71 = por %p69, %p70
      %s73 = sadd.s32 %s72, 1
      %p76 = scmp.eq.s32.totalorder %s17, 1
      %p77 = scmp.ne.s32.totalorder %s72, %s74
      %p78 = scmp.eq.s32.totalorder %s17, 0
      %p79 = por %p77, %p78
      %p80 = scmp.ne.s32.totalorder %s72, %s74
      %p81 = scmp.eq.s32.totalorder %s22, 1
      %p82 = por %p80, %p81
      %p83 = scmp.ne.s32.totalorder %s74, %s75
      %p84 = scmp.eq.s32.totalorder %s22, 0
      %p85 = por %p83, %p84
      %p86 = scmp.ne.s32.totalorder %s74, %s75
      %p87 = scmp.eq.s32.totalorder %s23, 1
      %p88 = por %p86, %p87
      %p90 = scmp.ne.s32.totalorder %s75, %s89
      %p91 = scmp.eq.s32.totalorder %s23, 0
      %p92 = por %p90, %p91
      %s94 = sadd.s32 %s93, 1
      %p97 = scmp.eq.s32.totalorder %s17, 1
      %p98 = scmp.ne.s32.totalorder %s93, %s95
      %p99 = scmp.eq.s32.totalorder %s17, 0
      %p100 = por %p98, %p99
      %p101 = scmp.ne.s32.totalorder %s93, %s95
      %p102 = scmp.eq.s32.totalorder %s22, 1
      %p103 = por %p101, %p102
      %p104 = scmp.ne.s32.totalorder %s95, %s96
      %p105 = scmp.eq.s32.totalorder %s22, 0
      %p106 = por %p104, %p105
      %p107 = scmp.ne.s32.totalorder %s95, %s96
      %p108 = scmp.eq.s32.totalorder %s23, 1
      %p109 = por %p107, %p108
      %p111 = scmp.ne.s32.totalorder %s96, %s110
      %p112 = scmp.eq.s32.totalorder %s23, 0
      %p113 = por %p111, %p112
      %s115 = sadd.s32 %s114, 1
      %p118 = scmp.eq.s32.totalorder %s17, 1
      %p119 = scmp.ne.s32.totalorder %s114, %s116
      %p120 = scmp.eq.s32.totalorder %s17, 0
      %p121 = por %p119, %p120
      %p122 = scmp.ne.s32.totalorder %s114, %s116
      %p123 = scmp.eq.s32.totalorder %s22, 1
      %p124 = por %p122, %p123
      %p125 = scmp.ne.s32.totalorder %s116, %s117
      %p126 = scmp.eq.s32.totalorder %s22, 0
      %p127 = por %p125, %p126
      %p128 = scmp.ne.s32.totalorder %s116, %s117
      %p129 = scmp.eq.s32.totalorder %s23, 1
      %p130 = por %p128, %p129
      %p132 = scmp.ne.s32.totalorder %s117, %s131
      %p133 = scmp.eq.s32.totalorder %s23, 0
      %p134 = por %p132, %p133
      %s135 = ssub.s32 %s17, %s24
      %p136 = scmp.eq.s32.totalorder %s135, 0
      %s138 = sadd.s32 %s137, 1
      %s139 = scalar_select %p136, %s137, %s138
      %p142 = pneg %p136
      %p143 = scmp.eq.s32.totalorder %s17, 1
      %p144 = por %p142, %p143
      %p145 = scmp.ne.s32.totalorder %s137, %s140
      %p146 = scmp.eq.s32.totalorder %s17, 0
      %p147 = por %p145, %p146
      %p148 = scmp.ne.s32.totalorder %s137, %s140
      %p149 = scmp.eq.s32.totalorder %s22, 1
      %p150 = por %p148, %p149
      %p151 = scmp.ne.s32.totalorder %s140, %s141
      %p152 = scmp.eq.s32.totalorder %s22, 0
      %p153 = por %p151, %p152
      %p154 = scmp.ne.s32.totalorder %s140, %s141
      %p155 = scmp.eq.s32.totalorder %s23, 1
      %p156 = por %p154, %p155
      %p158 = scmp.ne.s32.totalorder %s141, %s157
      %p159 = scmp.eq.s32.totalorder %s23, 0
      %p160 = por %p158, %p159
      %p161 = scmp.le.s32.totalorder 1, %s17
      %p162 = scmp.lt.s32.totalorder %s17, 3
      %p163 = pnand %p161, %p162
      %p164 = pneg %p163
      // Predicated region
      $region9: #{tpu_custom_call.1} parent=5 // pred_check
        _
      $region10: #{tpu_custom_call.1} parent=5 // pred_check_branch
        %166 = sbr.rel (%p163) target = $region12
      $region11: #{tpu_custom_call.1} parent=5 // pred_region
        %s167 = ssub.s32 %s17, 1
        // Predicated region
        $region13: #{tpu_custom_call.1} parent=11 // pred_check
          %p168 = pneg %p64
        $region14: #{tpu_custom_call.1} parent=11 // pred_check_branch
          %170 = sbr.rel (%p168) target = $region16
        $region15: #{tpu_custom_call.1} parent=11 // pred_region
          _
        $region16: #{tpu_custom_call.1} parent=11 // pred_fallthru
          _
        // Predicated region
        $region17: #{tpu_custom_call.1} parent=11 // pred_check
          %p171 = pneg %p85
        $region18: #{tpu_custom_call.1} parent=11 // pred_check_branch
          %173 = sbr.rel (%p171) target = $region20
        $region19: #{tpu_custom_call.1} parent=11 // pred_region
          _
        $region20: #{tpu_custom_call.1} parent=11 // pred_fallthru
          _
        // Predicated region
        $region21: #{tpu_custom_call.1} parent=11 // pred_check
          %p174 = pneg %p106
        $region22: #{tpu_custom_call.1} parent=11 // pred_check_branch
          %176 = sbr.rel (%p174) target = $region24
        $region23: #{tpu_custom_call.1} parent=11 // pred_region
          _
        $region24: #{tpu_custom_call.1} parent=11 // pred_fallthru
          _
        // Predicated region
        $region25: #{tpu_custom_call.1} parent=11 // pred_check
          %p177 = pneg %p127
        $region26: #{tpu_custom_call.1} parent=11 // pred_check_branch
          %179 = sbr.rel (%p177) target = $region28
        $region27: #{tpu_custom_call.1} parent=11 // pred_region
          _
        $region28: #{tpu_custom_call.1} parent=11 // pred_fallthru
          _
      $region12: #{tpu_custom_call.1} parent=5 // pred_fallthru
        _
      %p180 = scmp.lt.s32.totalorder %s17, 2
      // Predicated region
      $region29: #{tpu_custom_call.1} parent=5 // pred_check
        %p181 = pneg %p180
      $region30: #{tpu_custom_call.1} parent=5 // pred_check_branch
        %183 = sbr.rel (%p181) target = $region32
      $region31: #{tpu_custom_call.1} parent=5 // pred_region
        // Predicated region
        $region33: #{tpu_custom_call.1} parent=31 // pred_check
          %p184 = pneg %p37
        $region34: #{tpu_custom_call.1} parent=31 // pred_check_branch
          %186 = sbr.rel (%p184) target = $region36
        $region35: #{tpu_custom_call.1} parent=31 // pred_region
          %s187 = sand.u32 %s27, 1
          %s188 = scalar_lea.sflag [#allocation3], %s187
          %s189 = sand.u32 %s27, 1
          %s190 = smul.addr %s189, 64
          %s191 = scalar_lea.vmem [#allocation2], %s190
          %s193 = ssub.s32 1024, 1024
          %194 = vsyncadd %s188, %s193
          %s195 = smul.addr %s17, 8
          %s196 = smul.addr %s195, 128
          %s197 = scalar_lea.hbm %s0, %s196
          %s198 = sshll.u32 %s191, 4
          %s199 = int_to_ptr.vmem [resolvable:$true] %s198
          %204 = dma.hbm_to_vmem [thread:$0]  %s197, 1024, %s199, %s188, 128, 128, 8
        $region36: #{tpu_custom_call.1} parent=31 // pred_fallthru
          _
      $region32: #{tpu_custom_call.1} parent=5 // pred_fallthru
        _
      %p205 = scmp.le.s32.totalorder 1, %s17
      %p206 = scmp.lt.s32.totalorder %s17, 3
      %p207 = pnand %p205, %p206
      %p208 = pneg %p207
      // Predicated region
      $region37: #{tpu_custom_call.1} parent=5 // pred_check
        _
      $region38: #{tpu_custom_call.1} parent=5 // pred_check_branch
        %210 = sbr.rel (%p207) target = $region40
      $region39: #{tpu_custom_call.1} parent=5 // pred_region
        %s211 = ssub.s32 %s17, 1
        %s212 = sand.u32 %s30, 1
        %s213 = scalar_lea.sflag [#allocation3], %s212
        %s214 = sand.u32 %s30, 1
        %s215 = smul.addr %s214, 64
        %s216 = scalar_lea.vmem [#allocation2], %s215
        // Predicated region
        $region41: #{tpu_custom_call.1} parent=39 // pred_check
          %p217 = pneg %p43
        $region42: #{tpu_custom_call.1} parent=39 // pred_check_branch
          %219 = sbr.rel (%p217) target = $region44
        $region43: #{tpu_custom_call.1} parent=39 // pred_region
          %220 = dma.done %s213, 1024
        $region44: #{tpu_custom_call.1} parent=39 // pred_fallthru
          _
        %s221 = sand.u32 %s30, 1
        %s222 = scalar_lea.sflag [#allocation3], %s221
        %s223 = sand.u32 %s30, 1
        %s224 = smul.addr %s223, 64
        %s225 = scalar_lea.vmem [#allocation2], %s224
        %p226 = pneg %p43
        %p227 = pneg %p40
        %p228 = pneg %p64
        %p229 = pneg %p61
        %p230 = pneg %p85
        %p231 = pneg %p82
        %p232 = pneg %p106
        %p233 = pneg %p103
        %p234 = pneg %p127
        %p235 = pneg %p124
        %p236 = pneg %p153
        %p237 = pneg %p150
        %s238 = sand.u32 %s140, 1
        %s239 = scalar_lea.sflag [#allocation4], %s238
        %s240 = sand.u32 %s140, 1
        %s241 = smul.addr %s240, 64
        %s242 = scalar_lea.vmem [#allocation5], %s241
        %v243 = vld [vmem:[%s216] sm:$0xff]
        %v244 = vld [vmem:[%s216 + $0x8] sm:$0xff]
        %v245 = vld [vmem:[%s216 + $0x10] sm:$0xff]
        %v246 = vld [vmem:[%s216 + $0x18] sm:$0xff]
        %v247 = vld [vmem:[%s216 + $0x20] sm:$0xff]
        %v248 = vld [vmem:[%s216 + $0x28] sm:$0xff]
        %v249 = vld [vmem:[%s216 + $0x30] sm:$0xff]
        %v250 = vld [vmem:[%s216 + $0x38] sm:$0xff]
        %vm251 = vcmask 523264
        %v252 = vsel %vm251, %v243, 0.0
        %253 = vadd.xlane.f32.xlu0 %v252
        %v254 = vpop.xlane.xlu0 %253
        %v255 = vsel %vm251, %v244, 0.0
        %256 = vadd.xlane.f32.xlu0 %v255
        %v257 = vpop.xlane.xlu0 %256
        %v258 = vsel %vm251, %v245, 0.0
        %259 = vadd.xlane.f32.xlu0 %v258
        %v260 = vpop.xlane.xlu0 %259
        %v261 = vsel %vm251, %v246, 0.0
        %262 = vadd.xlane.f32.xlu0 %v261
        %v263 = vpop.xlane.xlu0 %262
        %v264 = vsel %vm251, %v247, 0.0
        %265 = vadd.xlane.f32.xlu0 %v264
        %v266 = vpop.xlane.xlu0 %265
        %v267 = vsel %vm251, %v248, 0.0
        %268 = vadd.xlane.f32.xlu0 %v267
        %v269 = vpop.xlane.xlu0 %268
        %v270 = vsel %vm251, %v249, 0.0
        %271 = vadd.xlane.f32.xlu0 %v270
        %v272 = vpop.xlane.xlu0 %271
        %v273 = vsel %vm251, %v250, 0.0
        %274 = vadd.xlane.f32.xlu0 %v273
        %v275 = vpop.xlane.xlu0 %274
        %v276 = vsel %vm251, %v243, -inf
        %277 = vmax.xlane.f32.xlu0 %v276
        %v278 = vpop.xlane.xlu0 %277
        %v279 = vsel %vm251, %v244, -inf
        %280 = vmax.xlane.f32.xlu0 %v279
        %v281 = vpop.xlane.xlu0 %280
        %v282 = vsel %vm251, %v245, -inf
        %283 = vmax.xlane.f32.xlu0 %v282
        %v284 = vpop.xlane.xlu0 %283
        %v285 = vsel %vm251, %v246, -inf
        %286 = vmax.xlane.f32.xlu0 %v285
        %v287 = vpop.xlane.xlu0 %286
        %v288 = vsel %vm251, %v247, -inf
        %289 = vmax.xlane.f32.xlu0 %v288
        %v290 = vpop.xlane.xlu0 %289
        %v291 = vsel %vm251, %v248, -inf
        %292 = vmax.xlane.f32.xlu0 %v291
        %v293 = vpop.xlane.xlu0 %292
        %v294 = vsel %vm251, %v249, -inf
        %295 = vmax.xlane.f32.xlu0 %v294
        %v296 = vpop.xlane.xlu0 %295
        %v297 = vsel %vm251, %v250, -inf
        %298 = vmax.xlane.f32.xlu0 %v297
        %v299 = vpop.xlane.xlu0 %298
        %v300 = vmul.f32 %v254, 0.015625
        %v301 = vmul.f32 %v257, 0.015625
        %v302 = vmul.f32 %v260, 0.015625
        %v303 = vmul.f32 %v263, 0.015625
        %v304 = vmul.f32 %v266, 0.015625
        %v305 = vmul.f32 %v269, 0.015625
        %v306 = vmul.f32 %v272, 0.015625
        %v307 = vmul.f32 %v275, 0.015625
        %v308 = vld [vmem:[%s1] sm:$0xff]
        %v309 = vld [vmem:[%s1 + $0x8] sm:$0xff]
        %v310 = vld [vmem:[%s1 + $0x10] sm:$0xff]
        %v311 = vld [vmem:[%s1 + $0x18] sm:$0xff]
        %v312 = vld [vmem:[%s1 + $0x20] sm:$0xff]
        %v313 = vld [vmem:[%s1 + $0x28] sm:$0xff]
        %v314 = vld [vmem:[%s1 + $0x30] sm:$0xff]
        %v315 = vld [vmem:[%s1 + $0x38] sm:$0xff]
        %v316 = vld [vmem:[%s2] sm:$0x1]
        %v317 = vld [vmem:[%s3] sm:$0xf]
        %v318 = vld [vmem:[%s4] sm:$0x1]
        %v327 = vlaneseq
        %v328 = vand.u32 %v327, 127
        %v329 = vlaneseq
        %v330 = vshrl.u32 %v329, 7
        %v331 = vsub.s32 %v328, %v330
        %v332 = vrot.slane %v300, %v331
        %v333 = vadd.s32 %v328, 4294967288
        %v334 = vlaneseq
        %v335 = vshrl.u32 %v334, 7
        %v336 = vsub.s32 %v333, %v335
        %v337 = vrot.slane %v301, %v336
        %vm338 = vcmask 130112
        %v339 = vsel %vm338, %v337, %v332
        %v340 = vadd.s32 %v328, 4294967280
        %v341 = vlaneseq
        %v342 = vshrl.u32 %v341, 7
        %v343 = vsub.s32 %v340, %v342
        %v344 = vrot.slane %v302, %v343
        %vm345 = vcmask 195712
        %v346 = vsel %vm345, %v344, %v339
        %v347 = vadd.s32 %v328, 4294967272
        %v348 = vlaneseq
        %v349 = vshrl.u32 %v348, 7
        %v350 = vsub.s32 %v347, %v349
        %v351 = vrot.slane %v303, %v350
        %vm352 = vcmask 261312
        %v353 = vsel %vm352, %v351, %v346
        %v354 = vadd.s32 %v328, 4294967264
        %v355 = vlaneseq
        %v356 = vshrl.u32 %v355, 7
        %v357 = vsub.s32 %v354, %v356
        %v358 = vrot.slane %v304, %v357
        %vm359 = vcmask 326912
        %v360 = vsel %vm359, %v358, %v353
        %v361 = vadd.s32 %v328, 4294967256
        %v362 = vlaneseq
        %v363 = vshrl.u32 %v362, 7
        %v364 = vsub.s32 %v361, %v363
        %v365 = vrot.slane %v305, %v364
        %vm366 = vcmask 392512
        %v367 = vsel %vm366, %v365, %v360
        %v368 = vadd.s32 %v328, 4294967248
        %v369 = vlaneseq
        %v370 = vshrl.u32 %v369, 7
        %v371 = vsub.s32 %v368, %v370
        %v372 = vrot.slane %v306, %v371
        %vm373 = vcmask 458112
        %v374 = vsel %vm373, %v372, %v367
        %v375 = vadd.s32 %v328, 4294967240
        %v376 = vlaneseq
        %v377 = vshrl.u32 %v376, 7
        %v378 = vsub.s32 %v375, %v377
        %v379 = vrot.slane %v307, %v378
        %vm380 = vcmask 523712
        %v381 = vsel %vm380, %v379, %v374
        %v391 = vlaneseq
        %v392 = vshrl.u32 %v391, 7
        %v393 = vsub.s32 %v328, %v392
        %v394 = vrot.slane %v278, %v393
        %v395 = vlaneseq
        %v396 = vshrl.u32 %v395, 7
        %v397 = vsub.s32 %v333, %v396
        %v398 = vrot.slane %v281, %v397
        %v399 = vsel %vm338, %v398, %v394
        %v400 = vlaneseq
        %v401 = vshrl.u32 %v400, 7
        %v402 = vsub.s32 %v340, %v401
        %v403 = vrot.slane %v284, %v402
        %v404 = vsel %vm345, %v403, %v399
        %v405 = vlaneseq
        %v406 = vshrl.u32 %v405, 7
        %v407 = vsub.s32 %v347, %v406
        %v408 = vrot.slane %v287, %v407
        %v409 = vsel %vm352, %v408, %v404
        %v410 = vlaneseq
        %v411 = vshrl.u32 %v410, 7
        %v412 = vsub.s32 %v354, %v411
        %v413 = vrot.slane %v290, %v412
        %v414 = vsel %vm359, %v413, %v409
        %v415 = vlaneseq
        %v416 = vshrl.u32 %v415, 7
        %v417 = vsub.s32 %v361, %v416
        %v418 = vrot.slane %v293, %v417
        %v419 = vsel %vm366, %v418, %v414
        %v420 = vlaneseq
        %v421 = vshrl.u32 %v420, 7
        %v422 = vsub.s32 %v368, %v421
        %v423 = vrot.slane %v296, %v422
        %v424 = vsel %vm373, %v423, %v419
        %v425 = vlaneseq
        %v426 = vshrl.u32 %v425, 7
        %v427 = vsub.s32 %v375, %v426
        %v428 = vrot.slane %v299, %v427
        %v429 = vsel %vm380, %v428, %v424
        %vm431 = vcmask 1040384
        %v432 = vsel %vm431, %v381, %v429
        %v434 = vlaneseq
        %v435 = vshrl.u32 %v434, 7
        %v436 = vsub.s32 0, %v435
        %v437 = vrot.slane %v316, %v436
        %v440 = vsel %vm251, %v432, 0
        %442 = vmatprep.subr.mxu0 0.0
        %443 = vmatpush1.msra.mxu0 0.0
        %444 = vmatprep.subr.mxu0 0.0
        %445 = vmatpush1.msra.mxu0 0.0
        %446 = vmatprep.subr.mxu0 0.0
        %447 = vmatpush1.msra.mxu0 0.0
        %448 = vmatprep.subr.mxu0 0.0
        %449 = vmatpush1.msra.mxu0 0.0
        %450 = vmatprep.subr.mxu0 0.0
        %451 = vmatpush1.msra.mxu0 0.0
        %452 = vmatprep.subr.mxu0 0.0
        %453 = vmatpush1.msra.mxu0 0.0
        %454 = vmatprep.subr.mxu0 0.0
        %455 = vmatpush1.msra.mxu0 0.0
        %456 = vmatprep.subr.mxu0 0.0
        %457 = vmatpush1.msra.mxu0 0.0
        %458 = vmatprep.subr.mxu0 0.0
        %459 = vmatpush1.msra.mxu0 %v315
        %460 = vmatprep.subr.mxu0 0.0
        %461 = vmatpush1.msra.mxu0 %v314
        %462 = vmatprep.subr.mxu0 0.0
        %463 = vmatpush1.msra.mxu0 %v313
        %464 = vmatprep.subr.mxu0 0.0
        %465 = vmatpush1.msra.mxu0 %v312
        %466 = vmatprep.subr.mxu0 0.0
        %467 = vmatpush1.msra.mxu0 %v311
        %468 = vmatprep.subr.mxu0 0.0
        %469 = vmatpush1.msra.mxu0 %v310
        %470 = vmatprep.subr.mxu0 0.0
        %471 = vmatpush1.msra.mxu0 %v309
        %472 = vmatprep.subr.mxu0 0.0
        %473 = vmatpush1.msra.mxu0 %v308
        %474 = vmatprep.subr.mxu0 0.0
        %475 = vmatpush2.msra.mxu0 0.0
        %476 = vmatprep.subr.mxu0 0.0
        %477 = vmatpush2.msra.mxu0 0.0
        %478 = vmatprep.subr.mxu0 0.0
        %479 = vmatpush2.msra.mxu0 0.0
        %480 = vmatprep.subr.mxu0 0.0
        %481 = vmatpush2.msra.mxu0 0.0
        %482 = vmatprep.subr.mxu0 0.0
        %483 = vmatpush2.msra.mxu0 0.0
        %484 = vmatprep.subr.mxu0 0.0
        %485 = vmatpush2.msra.mxu0 0.0
        %486 = vmatprep.subr.mxu0 0.0
        %487 = vmatpush2.msra.mxu0 0.0
        %488 = vmatprep.subr.mxu0 0.0
        %489 = vmatpush2.msra.mxu0 0.0
        %490 = vmatprep.subr.mxu0 0.0
        %491 = vmatpush2.msra.mxu0 0.0
        %492 = vmatprep.subr.mxu0 0.0
        %493 = vmatpush2.msra.mxu0 0.0
        %494 = vmatprep.subr.mxu0 0.0
        %495 = vmatpush2.msra.mxu0 0.0
        %496 = vmatprep.subr.mxu0 0.0
        %497 = vmatpush2.msra.mxu0 0.0
        %498 = vmatprep.subr.mxu0 0.0
        %499 = vmatpush2.msra.mxu0 0.0
        %500 = vmatprep.subr.mxu0 0.0
        %501 = vmatpush2.msra.mxu0 0.0
        %502 = vmatprep.subr.mxu0 0.0
        %503 = vmatpush2.msra.mxu0 0.0
        %504 = vmatprep.subr.mxu0 0.0
        %505 = vmatpush2.msra.mxu0 0.0
        %506 = vmatprep.mubr.f32.mxu0 0.0
        %507 = vmatmul.mubr.f32.gmra.mxu0 %v440
        %v508 = vpop.f32.mrf.mxu0
        %v509 = vadd.f32 %v437, %v508
        %v510 = vpop.f32.mrf.mxu0
        %511 = vdwg.mxu0
        %v512 = vmax.f32 %v509, 0.0
        %v514 = vlaneseq
        %v515 = vshrl.u32 %v514, 7
        %v516 = vsub.s32 0, %v515
        %v517 = vrot.slane %v318, %v516
        %vm519 = vcmask 31744
        %v521 = vsel %vm519, %v512, 0
        %vm523 = vcmask 1043456
        %v525 = vsel %vm523, %v317, 0
        %527 = vmatprep.subr.mxu0 0.0
        %528 = vmatpush1.msra.mxu0 0.0
        %529 = vmatprep.subr.mxu0 0.0
        %530 = vmatpush1.msra.mxu0 0.0
        %531 = vmatprep.subr.mxu0 0.0
        %532 = vmatpush1.msra.mxu0 0.0
        %533 = vmatprep.subr.mxu0 0.0
        %534 = vmatpush1.msra.mxu0 0.0
        %535 = vmatprep.subr.mxu0 0.0
        %536 = vmatpush1.msra.mxu0 0.0
        %537 = vmatprep.subr.mxu0 0.0
        %538 = vmatpush1.msra.mxu0 0.0
        %539 = vmatprep.subr.mxu0 0.0
        %540 = vmatpush1.msra.mxu0 0.0
        %541 = vmatprep.subr.mxu0 0.0
        %542 = vmatpush1.msra.mxu0 0.0
        %543 = vmatprep.subr.mxu0 0.0
        %544 = vmatpush1.msra.mxu0 0.0
        %545 = vmatprep.subr.mxu0 0.0
        %546 = vmatpush1.msra.mxu0 0.0
        %547 = vmatprep.subr.mxu0 0.0
        %548 = vmatpush1.msra.mxu0 0.0
        %549 = vmatprep.subr.mxu0 0.0
        %550 = vmatpush1.msra.mxu0 0.0
        %551 = vmatprep.subr.mxu0 0.0
        %552 = vmatpush1.msra.mxu0 0.0
        %553 = vmatprep.subr.mxu0 0.0
        %554 = vmatpush1.msra.mxu0 0.0
        %555 = vmatprep.subr.mxu0 0.0
        %556 = vmatpush1.msra.mxu0 0.0
        %557 = vmatprep.subr.mxu0 0.0
        %558 = vmatpush1.msra.mxu0 %v525
        %559 = vmatprep.subr.mxu0 0.0
        %560 = vmatpush2.msra.mxu0 0.0
        %561 = vmatprep.subr.mxu0 0.0
        %562 = vmatpush2.msra.mxu0 0.0
        %563 = vmatprep.subr.mxu0 0.0
        %564 = vmatpush2.msra.mxu0 0.0
        %565 = vmatprep.subr.mxu0 0.0
        %566 = vmatpush2.msra.mxu0 0.0
        %567 = vmatprep.subr.mxu0 0.0
        %568 = vmatpush2.msra.mxu0 0.0
        %569 = vmatprep.subr.mxu0 0.0
        %570 = vmatpush2.msra.mxu0 0.0
        %571 = vmatprep.subr.mxu0 0.0
        %572 = vmatpush2.msra.mxu0 0.0
        %573 = vmatprep.subr.mxu0 0.0
        %574 = vmatpush2.msra.mxu0 0.0
        %575 = vmatprep.subr.mxu0 0.0
        %576 = vmatpush2.msra.mxu0 0.0
        %577 = vmatprep.subr.mxu0 0.0
        %578 = vmatpush2.msra.mxu0 0.0
        %579 = vmatprep.subr.mxu0 0.0
        %580 = vmatpush2.msra.mxu0 0.0
        %581 = vmatprep.subr.mxu0 0.0
        %582 = vmatpush2.msra.mxu0 0.0
        %583 = vmatprep.subr.mxu0 0.0
        %584 = vmatpush2.msra.mxu0 0.0
        %585 = vmatprep.subr.mxu0 0.0
        %586 = vmatpush2.msra.mxu0 0.0
        %587 = vmatprep.subr.mxu0 0.0
        %588 = vmatpush2.msra.mxu0 0.0
        %589 = vmatprep.subr.mxu0 0.0
        %590 = vmatpush2.msra.mxu0 0.0
        %591 = vmatprep.mubr.f32.mxu0 0.0
        %592 = vmatmul.mubr.f32.gmra.mxu0 %v521
        %v593 = vpop.f32.mrf.mxu0
        %v594 = vadd.f32 %v517, %v593
        %v595 = vpop.f32.mrf.mxu0
        %596 = vdwg.mxu0
        %v597 = vmax.f32 %v594, 0.0
        %v599 = vrot.slane %v597, 1
        %v601 = vadd.f32 %v597, %v599
        %v602 = vxor.u32 %v601, 2147483648
        %v603 = vmul.f32 %v602, 1.442695
        %v604 = vpow.pop %v603
        %v605 = vadd.f32 %v604, 1.0
        %v606 = vrcp.pop %v605
        %v607 = vmul.f32 1.0, %v606
        %v608 = vlaneseq
        %v609 = vshrl.u32 %v608, 7
        %v610 = vsub.s32 0, %v609
        %v611 = vrot.slane %v607, %v610
        %613 = vbcast.lane.b32.xlu0 %v611, 256
        %v614 = vpop.permute.xlu0 %613
        %s616 = sor.u32 256, 8
        %617 = vbcast.lane.b32.xlu0 %v611, %s616
        %v618 = vpop.permute.xlu0 %617
        %s620 = sor.u32 256, 16
        %621 = vbcast.lane.b32.xlu0 %v611, %s620
        %v622 = vpop.permute.xlu0 %621
        %s624 = sor.u32 256, 24
        %625 = vbcast.lane.b32.xlu0 %v611, %s624
        %v626 = vpop.permute.xlu0 %625
        %s628 = sor.u32 256, 32
        %629 = vbcast.lane.b32.xlu0 %v611, %s628
        %v630 = vpop.permute.xlu0 %629
        %s632 = sor.u32 256, 40
        %633 = vbcast.lane.b32.xlu0 %v611, %s632
        %v634 = vpop.permute.xlu0 %633
        %s636 = sor.u32 256, 48
        %637 = vbcast.lane.b32.xlu0 %v611, %s636
        %v638 = vpop.permute.xlu0 %637
        %s640 = sor.u32 256, 56
        %641 = vbcast.lane.b32.xlu0 %v611, %s640
        %v642 = vpop.permute.xlu0 %641
        %v643 = vmul.f32 %v243, %v614
        %v644 = vmul.f32 %v244, %v618
        %v645 = vmul.f32 %v245, %v622
        %v646 = vmul.f32 %v246, %v626
        %v647 = vmul.f32 %v247, %v630
        %v648 = vmul.f32 %v248, %v634
        %v649 = vmul.f32 %v249, %v638
        %v650 = vmul.f32 %v250, %v642
        %651 = vst.msk [vmem:[%s242] sm:$0xff] %vm251, %v643
        %652 = vst.msk [vmem:[%s242 + $0x8] sm:$0xff] %vm251, %v644
        %653 = vst.msk [vmem:[%s242 + $0x10] sm:$0xff] %vm251, %v645
        %654 = vst.msk [vmem:[%s242 + $0x18] sm:$0xff] %vm251, %v646
        %655 = vst.msk [vmem:[%s242 + $0x20] sm:$0xff] %vm251, %v647
        %656 = vst.msk [vmem:[%s242 + $0x28] sm:$0xff] %vm251, %v648
        %657 = vst.msk [vmem:[%s242 + $0x30] sm:$0xff] %vm251, %v649
        %658 = vst.msk [vmem:[%s242 + $0x38] sm:$0xff] %vm251, %v650
        %s659 = sand.u32 %s140, 1
        %s660 = scalar_lea.sflag [#allocation4], %s659
        %s661 = sand.u32 %s140, 1
        %s662 = smul.addr %s661, 64
        %s663 = scalar_lea.vmem [#allocation5], %s662
        // Predicated region
        $region45: #{tpu_custom_call.1} parent=39 // pred_check
          %p664 = pneg %p150
        $region46: #{tpu_custom_call.1} parent=39 // pred_check_branch
          %666 = sbr.rel (%p664) target = $region48
        $region47: #{tpu_custom_call.1} parent=39 // pred_region
          %s668 = ssub.s32 1024, 1024
          %669 = vsyncadd %s660, %s668
          %s670 = smul.addr %s22, 8
          %s671 = smul.addr %s670, 128
          %s672 = scalar_lea.hbm %s5, %s671
          %s673 = sshll.u32 %s663, 4
          %s674 = int_to_ptr.vmem [resolvable:$true] %s673
          %679 = dma.vmem_to_hbm [thread:$0]  %s674, 1024, %s672, %s660, 128, 128, 8
        $region48: #{tpu_custom_call.1} parent=39 // pred_fallthru
          _
      $region40: #{tpu_custom_call.1} parent=5 // pred_fallthru
        _
      %p680 = scmp.le.s32.totalorder 2, %s17
      // Predicated region
      $region49: #{tpu_custom_call.1} parent=5 // pred_check
        %p681 = pneg %p680
      $region50: #{tpu_custom_call.1} parent=5 // pred_check_branch
        %683 = sbr.rel (%p681) target = $region52
      $region51: #{tpu_custom_call.1} parent=5 // pred_region
        %s684 = ssub.s32 %s17, 2
        // Predicated region
        $region53: #{tpu_custom_call.1} parent=51 // pred_check
          %p685 = pneg %p156
        $region54: #{tpu_custom_call.1} parent=51 // pred_check_branch
          %687 = sbr.rel (%p685) target = $region56
        $region55: #{tpu_custom_call.1} parent=51 // pred_region
          %s688 = sand.u32 %s141, 1
          %s689 = scalar_lea.sflag [#allocation4], %s688
          %s690 = sand.u32 %s141, 1
          %s691 = smul.addr %s690, 64
          %s692 = scalar_lea.vmem [#allocation5], %s691
          %693 = dma.done %s689, 1024
        $region56: #{tpu_custom_call.1} parent=51 // pred_fallthru
          _
      $region52: #{tpu_custom_call.1} parent=5 // pred_fallthru
        _
    $region6: #{tpu_custom_call.1} parent=1 // loop_footer
      %s21 = sadd.s32 1, %s17
    $region7: #{tpu_custom_call.1} parent=1 // loop_footer_branch
      %16 = sbr.rel target = $region3
    $region8: #{tpu_custom_call.1} parent=1 // loop_exit
      _
    %694 = vsyncpa [#allocation3], 1
    %s695 = scalar_lea.sflag [#allocation3], 1
    %696 = vsyncpa %s695, 1
    %697 = vsyncpa [#allocation4], 1
    %s698 = scalar_lea.sflag [#allocation4], 1
    %699 = vsyncpa %s698, 1

</llo_original>
